<compile_context>
chip_gen: v7x
topology: tpu7x:2x2x1
jax: 0.10.0
libtpu: 0.0.40
codegen_flags: <defaults>
</compile_context>

<pallas_src>
import jax
import jax.numpy as jnp
from jax.experimental import pallas as pl
from jax.experimental.pallas import tpu as pltpu


def _round_up(n, m):
    return ((n + m - 1) // m) * m


def _hlr_kernel(x_ref, w_ref, b_ref, out_ref):
    # x_ref:   (D, TB) VMEM — last-timestep features, feature-major (batch on lanes)
    # w_ref:   (D,)    SMEM — fc weight
    # b_ref:   (1,)    SMEM — fc bias
    # out_ref: (1, TB) VMEM — recall per batch row, lane-dense
    D = x_ref.shape[0]

    # fc: h = sum_d w[d] * x[d, :] + b, unrolled as scalar * row FMAs.
    # Every intermediate is a lane-dense (1, TB) vector; stays on the VPU.
    h = w_ref[0] * x_ref[0:1, :].astype(jnp.float32)
    for d in range(1, D):
        h = h + w_ref[d] * x_ref[d:d + 1, :].astype(jnp.float32)
    h = h + b_ref[0]

    # time-delta feature: x[:, :, 1] in the original layout == row 1 here.
    t = x_ref[1:2, :].astype(jnp.float32)

    # recall = 0.5 ** |t / h| == 2 ** (-|t / h|)   (exp2 -> EUP slot)
    # NOTE: h == 0 gives inf/nan exactly like the PyTorch module (no clamp).
    recall = jnp.exp2(-jnp.abs(t / h))
    out_ref[...] = recall.astype(out_ref.dtype)


def hlr_forward(x, w, b, *, max_rows_per_tile=32768):
    """x: (B, S, D), w: (D,), b: ()  ->  (B, 1)  (recall at the last timestep)."""
    B, S, D = x.shape
    assert D >= 2, "HLR uses feature index 1 as the time delta"

    # Only the last timestep contributes: one fused slice+transpose copy puts
    # the batch dimension on the lane axis.  No extra pad pass.
    x_t = jnp.transpose(x[:, -1, :], (1, 0))            # (D, B)

    w2 = jnp.asarray(w, jnp.float32).reshape(D)
    b2 = jnp.asarray(b, jnp.float32).reshape(1)

    # Lane tiling over the batch: TB a multiple of 128 (lane-dense, unmasked
    # stores except on the final partial tile).  At the default cap a tile is
    # ~1 MiB/buffer, so VMEM is never the limiter; large B gets >= 2 tiles and
    # the "parallel" grid axis shards across v7x's two TensorCores.
    TB = min(max_rows_per_tile, _round_up(B, 128))
    num_tiles = pl.cdiv(B, TB)

    recall = pl.pallas_call(
        _hlr_kernel,
        out_shape=jax.ShapeDtypeStruct((1, B), jnp.float32),
        grid=(num_tiles,),
        in_specs=[
            pl.BlockSpec((D, TB), lambda i: (0, i)),                # features
            pl.BlockSpec(memory_space=pltpu.MemorySpace.SMEM),      # fc weight
            pl.BlockSpec(memory_space=pltpu.MemorySpace.SMEM),      # fc bias
        ],
        out_specs=pl.BlockSpec((1, TB), lambda i: (0, i)),          # lane-dense
        compiler_params=pltpu.CompilerParams(
            dimension_semantics=("parallel",)),
    )(x_t, w2, b2)

    # recall[:, -1, :] in the PyTorch module -> (B, 1)
    return recall.reshape(B, 1)


def hlr_reference(x, w, b):
    """Pure-JAX reference of the PyTorch forward."""
    t = x[:, :, 1:2]                                   # (B, S, 1)
    h = jnp.einsum("bsd,d->bs", x, w)[..., None] + b   # (B, S, 1)
    recall = jnp.power(0.5, jnp.abs(t / h))            # (B, S, 1)
    return recall[:, -1, :]                            # (B, 1)


if __name__ == "__main__":
    # Small deterministic setup: input_dim = 6 (Duolingo variant), batch = 2,
    # sequence length = 8.
    B, S, D = 2, 8, 6
    key = jax.random.PRNGKey(0)
    kx, kw, kb = jax.random.split(key, 3)

    # nn.Linear(D, 1) init: uniform(-1/sqrt(D), 1/sqrt(D))
    bound = 1.0 / jnp.sqrt(jnp.float32(D))
    w = jax.random.uniform(kw, (D,), jnp.float32, -bound, bound)
    b = jax.random.uniform(kb, (), jnp.float32, -bound, bound)
    x = jax.random.normal(kx, (B, S, D), jnp.float32)

    out = jax.block_until_ready(hlr_forward(x, w, b))
    ref = hlr_reference(x, w, b)

    assert out.shape == (B, 1), out.shape
    assert jnp.allclose(out, ref, rtol=1e-5, atol=1e-5), (out, ref)

    print("KERNEL_OK")
</pallas_src>

<mosaic_0001>
module attributes {stable_mosaic.version = 11 : i64} {
  func.func @_hlr_kernel(%arg0: i32, %arg1: memref<6x128xf32, #tpu.memory_space<vmem>>, %arg2: memref<6xf32, #tpu.memory_space<smem>>, %arg3: memref<1xf32, #tpu.memory_space<smem>>, %arg4: memref<1x128xf32, #tpu.memory_space<vmem>>) attributes {dimension_semantics = [#tpu.dimension_semantics<parallel>], iteration_bounds = array<i64: 1>, scalar_prefetch = 0 : i64, scratch_operands = 0 : i64, tpu.core_type = #tpu.core_type<tc>, window_params = [{transform_indices = @transform_0, window_bounds = array<i64: 6, 128>}, {transform_indices = @transform_1, window_bounds = array<i64: 6>}, {transform_indices = @transform_2, window_bounds = array<i64: 1>}, {transform_indices = @transform_3, window_bounds = array<i64: 1, 128>}]} {
    %c0 = arith.constant 0 : index
    %0 = memref.load %arg2[%c0] : memref<6xf32, #tpu.memory_space<smem>>
    %c0_0 = arith.constant 0 : index
    %c0_1 = arith.constant 0 : index
    %1 = vector.load %arg1[%c0_0, %c0_1] : memref<6x128xf32, #tpu.memory_space<vmem>>, vector<1x128xf32>
    %2 = vector.broadcast %0 : f32 to vector<1x128xf32>
    %3 = arith.mulf %2, %1 : vector<1x128xf32>
    %c1 = arith.constant 1 : index
    %4 = memref.load %arg2[%c1] : memref<6xf32, #tpu.memory_space<smem>>
    %c1_2 = arith.constant 1 : index
    %c0_3 = arith.constant 0 : index
    %5 = vector.load %arg1[%c1_2, %c0_3] : memref<6x128xf32, #tpu.memory_space<vmem>>, vector<1x128xf32>
    %6 = vector.broadcast %4 : f32 to vector<1x128xf32>
    %7 = arith.mulf %6, %5 : vector<1x128xf32>
    %8 = arith.addf %3, %7 : vector<1x128xf32>
    %c2 = arith.constant 2 : index
    %9 = memref.load %arg2[%c2] : memref<6xf32, #tpu.memory_space<smem>>
    %c2_4 = arith.constant 2 : index
    %c0_5 = arith.constant 0 : index
    %10 = vector.load %arg1[%c2_4, %c0_5] : memref<6x128xf32, #tpu.memory_space<vmem>>, vector<1x128xf32>
    %11 = vector.broadcast %9 : f32 to vector<1x128xf32>
    %12 = arith.mulf %11, %10 : vector<1x128xf32>
    %13 = arith.addf %8, %12 : vector<1x128xf32>
    %c3 = arith.constant 3 : index
    %14 = memref.load %arg2[%c3] : memref<6xf32, #tpu.memory_space<smem>>
    %c3_6 = arith.constant 3 : index
    %c0_7 = arith.constant 0 : index
    %15 = vector.load %arg1[%c3_6, %c0_7] : memref<6x128xf32, #tpu.memory_space<vmem>>, vector<1x128xf32>
    %16 = vector.broadcast %14 : f32 to vector<1x128xf32>
    %17 = arith.mulf %16, %15 : vector<1x128xf32>
    %18 = arith.addf %13, %17 : vector<1x128xf32>
    %c4 = arith.constant 4 : index
    %19 = memref.load %arg2[%c4] : memref<6xf32, #tpu.memory_space<smem>>
    %c4_8 = arith.constant 4 : index
    %c0_9 = arith.constant 0 : index
    %20 = vector.load %arg1[%c4_8, %c0_9] : memref<6x128xf32, #tpu.memory_space<vmem>>, vector<1x128xf32>
    %21 = vector.broadcast %19 : f32 to vector<1x128xf32>
    %22 = arith.mulf %21, %20 : vector<1x128xf32>
    %23 = arith.addf %18, %22 : vector<1x128xf32>
    %c5 = arith.constant 5 : index
    %24 = memref.load %arg2[%c5] : memref<6xf32, #tpu.memory_space<smem>>
    %c5_10 = arith.constant 5 : index
    %c0_11 = arith.constant 0 : index
    %25 = vector.load %arg1[%c5_10, %c0_11] : memref<6x128xf32, #tpu.memory_space<vmem>>, vector<1x128xf32>
    %26 = vector.broadcast %24 : f32 to vector<1x128xf32>
    %27 = arith.mulf %26, %25 : vector<1x128xf32>
    %28 = arith.addf %23, %27 : vector<1x128xf32>
    %c0_12 = arith.constant 0 : index
    %29 = memref.load %arg3[%c0_12] : memref<1xf32, #tpu.memory_space<smem>>
    %30 = vector.broadcast %29 : f32 to vector<1x128xf32>
    %31 = arith.addf %28, %30 : vector<1x128xf32>
    %c1_13 = arith.constant 1 : index
    %c0_14 = arith.constant 0 : index
    %32 = vector.load %arg1[%c1_13, %c0_14] : memref<6x128xf32, #tpu.memory_space<vmem>>, vector<1x128xf32>
    %33 = arith.divf %32, %31 : vector<1x128xf32>
    %34 = math.absf %33 : vector<1x128xf32>
    %cst = arith.constant 0.000000e+00 : f32
    %35 = vector.broadcast %cst : f32 to vector<1x128xf32>
    %36 = arith.subf %35, %34 : vector<1x128xf32>
    %37 = math.exp2 %36 : vector<1x128xf32>
    %c0_15 = arith.constant 0 : index
    %c0_16 = arith.constant 0 : index
    %38 = vector.load %arg4[%c0_15, %c0_16] : memref<1x128xf32, #tpu.memory_space<vmem>>, vector<1x128xf32>
    tpu.vector_store %arg4[%c0_15, %c0_16], %37 {strides = array<i32>} : memref<1x128xf32, #tpu.memory_space<vmem>>, vector<1x128xf32>,
    return
  }
  func.func @transform_0(%arg0: i32) -> (i32, i32) {
    %c0_i32 = arith.constant 0 : i32
    %c0_i32_0 = arith.constant 0 : i32
    return %c0_i32, %arg0 : i32, i32
  }
  func.func @transform_1(%arg0: i32) -> i32 {
    %c0_i32 = arith.constant 0 : i32
    %c0_i32_0 = arith.constant 0 : i32
    return %c0_i32 : i32
  }
  func.func @transform_2(%arg0: i32) -> i32 {
    %c0_i32 = arith.constant 0 : i32
    %c0_i32_0 = arith.constant 0 : i32
    return %c0_i32 : i32
  }
  func.func @transform_3(%arg0: i32) -> (i32, i32) {
    %c0_i32 = arith.constant 0 : i32
    %c0_i32_0 = arith.constant 0 : i32
    return %c0_i32, %arg0 : i32, i32
  }
}

</mosaic_0001>

<llo_original>
// kernel: tpu_custom_call.1
$region0: #{tpu_custom_call.1}
  #allocation0 [shape = 'u32[]', space=smem, size = 0x4, offset = 0x4, fixed_abs, tag = 'smem constant byte address 0x4 - core index']
  #allocation1 [shape = 'u32[144,128]{1,0:T(1,128)}', space=vmem, size = 0x12000, scoped, tag = 'internal scratch']
  #allocation2 [shape = 'f32[1]{0:T(128)S(6)}', space=smem, size = 0x200, scoped, tag = 'scoped memory for tpu_custom_call.1']
  %s0 = inlined_call_operand.vmem [shape: f32[6,2], index: 0, kind: input, shape index: {}]
  %s1 = inlined_call_operand.vmem [shape: f32[6], index: 1, kind: input, shape index: {}]
  %s2 = inlined_call_operand.<no memory space> [shape: f32[1], index: 2, kind: input, shape index: {}]
  %s3 = inlined_call_operand.hbm [shape: f32[1,2], index: 3, kind: output, shape index: {}]
  %s4 = sld [smem:[#allocation0]]
  $region26: #{tpu_custom_call.1} parent=0
    _
  %s6 = ssub.s32 1, %s4
  %s7 = scalar_select 0, %s6, %s4
  %8 = sst [smem:[#allocation2]] %s2
  $region1: #{tpu_custom_call.1} parent=0
    #allocation3 [shape = 'u8[512]{0}', space=smem, size = 0x200, scoped, tag = 'input window, operand 1, single buffered']
    #allocation4 [shape = 's32[1]{0}', space=sflag, size = 0x4, scoped, tag = 'scoped memory for tpu_custom_call.1']
    #allocation5 [shape = 's32[1]{0}', space=sflag, size = 0x4, scoped, tag = 'scoped memory for tpu_custom_call.1']
    #allocation6 [shape = 'u8[512]{0}', space=vmem, size = 0x400, scoped, tag = 'output window, operand 0, single buffered']
    %9 = vsyncpa [#allocation5], 0
    %10 = vsyncpa [#allocation4], 0
    // Predicated region
    $region2: #{tpu_custom_call.1} parent=1 // pred_check
      _
    $region3: #{tpu_custom_call.1} parent=1 // pred_check_branch
      %12 = sbr.rel (0) target = $region5
    $region4: #{tpu_custom_call.1} parent=1 // pred_region
      _
    $region5: #{tpu_custom_call.1} parent=1 // pred_fallthru
      _
    // Predicated region
    $region6: #{tpu_custom_call.1} parent=1 // pred_check
      _
    $region7: #{tpu_custom_call.1} parent=1 // pred_check_branch
      %14 = sbr.rel (0) target = $region9
    $region8: #{tpu_custom_call.1} parent=1 // pred_region
      %s16 = ssub.s32 16, 16
      %17 = vsyncadd [#allocation5], %s16
      %s19 = sshll.u32 %s1, 4
      %s20 = int_to_ptr.vmem [resolvable:$true] %s19
      %22 = dma.vmem_to_smem %s20, 16, [#allocation3], [#allocation5]
    $region9: #{tpu_custom_call.1} parent=1 // pred_fallthru
      _
    // Predicated region
    $region10: #{tpu_custom_call.1} parent=1 // pred_check
      _
    $region11: #{tpu_custom_call.1} parent=1 // pred_check_branch
      %24 = sbr.rel (0) target = $region13
    $region12: #{tpu_custom_call.1} parent=1 // pred_region
      _
    $region13: #{tpu_custom_call.1} parent=1 // pred_fallthru
      _
    // Predicated region
    $region14: #{tpu_custom_call.1} parent=1 // pred_check
      _
    $region15: #{tpu_custom_call.1} parent=1 // pred_check_branch
      %26 = sbr.rel (0) target = $region17
    $region16: #{tpu_custom_call.1} parent=1 // pred_region
      %27 = dma.done [#allocation5], 16
    $region17: #{tpu_custom_call.1} parent=1 // pred_fallthru
      _
    %28 = sfence
    %s29 = sld [smem:[#allocation3]]
    %v30 = vld [vmem:[%s0] sm:$0x1]
    %v31 = vstv %s29
    %v32 = vmul.f32 %v31, %v30
    %s33 = sld [smem:[#allocation3 + $0x1]]
    %v34 = vld [vmem:[%s0 + $0x1] sm:$0x1]
    %v35 = vstv %s33
    %v36 = vmul.f32 %v35, %v34
    %v37 = vadd.f32 %v32, %v36
    %s38 = sld [smem:[#allocation3 + $0x2]]
    %v39 = vld [vmem:[%s0 + $0x2] sm:$0x1]
    %v40 = vstv %s38
    %v41 = vmul.f32 %v40, %v39
    %v42 = vadd.f32 %v37, %v41
    %s43 = sld [smem:[#allocation3 + $0x3]]
    %v44 = vld [vmem:[%s0 + $0x3] sm:$0x1]
    %v45 = vstv %s43
    %v46 = vmul.f32 %v45, %v44
    %v47 = vadd.f32 %v42, %v46
    %s48 = sld [smem:[#allocation3 + $0x4]]
    %v49 = vld [vmem:[%s0 + $0x4] sm:$0x1]
    %v50 = vstv %s48
    %v51 = vmul.f32 %v50, %v49
    %v52 = vadd.f32 %v47, %v51
    %s53 = sld [smem:[#allocation3 + $0x5]]
    %v54 = vld [vmem:[%s0 + $0x5] sm:$0x1]
    %v55 = vstv %s53
    %v56 = vmul.f32 %v55, %v54
    %v57 = vadd.f32 %v52, %v56
    %s58 = sld [smem:[#allocation2]]
    %v59 = vstv %s58
    %v60 = vadd.f32 %v57, %v59
    %v61 = vrcp.pop %v60
    %v62 = vmul.f32 %v34, %v61
    %v63 = vand.u32 2147483647, %v62
    %v64 = vsub.f32 0.0, %v63
    %v65 = vpow.pop %v64
    %66 = vst [vmem:[#allocation6] sm:$0x1] %v65
    // Predicated region
    $region18: #{tpu_custom_call.1} parent=1 // pred_check
      _
    $region19: #{tpu_custom_call.1} parent=1 // pred_check_branch
      %68 = sbr.rel (0) target = $region21
    $region20: #{tpu_custom_call.1} parent=1 // pred_region
      %s70 = ssub.s32 16, 16
      %71 = vsyncadd [#allocation4], %s70
      %s73 = sshll.u32 [#allocation6], 4
      %s74 = int_to_ptr.vmem [resolvable:$true] %s73
      %76 = dma.vmem_to_hbm [thread:$0]  %s74, 16, %s3, [#allocation4]
    $region21: #{tpu_custom_call.1} parent=1 // pred_fallthru
      _
    // Predicated region
    $region22: #{tpu_custom_call.1} parent=1 // pred_check
      _
    $region23: #{tpu_custom_call.1} parent=1 // pred_check_branch
      %78 = sbr.rel (0) target = $region25
    $region24: #{tpu_custom_call.1} parent=1 // pred_region
      %79 = dma.done [#allocation4], 16
    $region25: #{tpu_custom_call.1} parent=1 // pred_fallthru
      _
    %80 = vsyncpa [#allocation4], 1
    %81 = vsyncpa [#allocation5], 1

</llo_original>
